<compile_context>
chip_gen: v5e
topology: v5e:2x2
jax: 0.10.0
libtpu: 0.0.40
codegen_flags: <defaults>
</compile_context>

<pallas_src>
import jax
import jax.numpy as jnp
import numpy as np
from jax.experimental import pallas as pl
from jax.experimental.pallas import tpu as pltpu


# ---------------------------------------------------------------------------
# Pallas kernel: identity forward (abstract BaseModel.forward has no compute).
# TODO(synk): BaseModel.forward is abstract; subclasses define real compute.
# ---------------------------------------------------------------------------
def _identity_kernel(x_ref, o_ref):
    # Elementwise pass-through of the (block_rows, lanes) VMEM tile.
    o_ref[...] = x_ref[...]


# ~2 MiB per tile: with BlockSpec double-buffering (2 in-bufs + 2 out-bufs)
# this is 8 MiB of VMEM — fits every generation's scoped-VMEM budget.
_TARGET_BLOCK_BYTES = 2 * 1024 * 1024


def _lane_dense_layout(total_elems):
    """Pick a (rows, lanes) factorization with a large, 128-multiple lane dim."""
    for lanes in (4096, 2048, 1024, 512, 256, 128):
        if total_elems % lanes == 0:
            return total_elems // lanes, lanes
    return None


def _identity_pallas_2d(x2d):
    rows, lanes = x2d.shape
    itemsize = x2d.dtype.itemsize
    row_bytes = lanes * itemsize

    target_rows = max(8, _TARGET_BLOCK_BYTES // row_bytes)
    target_rows = (target_rows // 8) * 8  # keep sublane-aligned blocks
    if rows <= target_rows:
        block_rows = rows          # full-extent block (legal even if rows < 8)
    else:
        block_rows = target_rows   # multiple of 8; lanes is a multiple of 128

    grid = (pl.cdiv(rows, block_rows),)

    return pl.pallas_call(
        _identity_kernel,
        out_shape=jax.ShapeDtypeStruct((rows, lanes), x2d.dtype),
        grid=grid,
        in_specs=[pl.BlockSpec((block_rows, lanes), lambda i: (i, 0))],
        out_specs=pl.BlockSpec((block_rows, lanes), lambda i: (i, 0)),
        # Output buffer aliases the input buffer: no separate HBM allocation
        # and no extra writeback when this runs as an intermediate under jit.
        input_output_aliases={0: 0},
        compiler_params=pltpu.CompilerParams(
            dimension_semantics=("parallel",),
            vmem_limit_bytes=32 * 1024 * 1024,
        ),
    )(x2d)


@jax.jit
def _identity_forward_kernel_path(x):
    total = x.size
    layout = _lane_dense_layout(total)
    if layout is None:
        # Total element count not a multiple of 128: a lane-dense slab would
        # need padding; the identity is returned directly (exact + free).
        return x
    rows, lanes = layout
    y2d = _identity_pallas_2d(x.reshape(rows, lanes))
    return y2d.reshape(x.shape)


def base_model_forward(x: jax.Array, *, use_kernel: bool = True) -> jax.Array:
    """Identity forward of BaseModel.

    use_kernel=False is the fastest production path (a true no-op: zero HBM
    traffic, no kernel launch).  use_kernel=True routes through the Pallas
    identity-copy kernel so the TPU path is exercised.
    """
    if x.size == 0 or not use_kernel:
        return x
    return _identity_forward_kernel_path(x)


# ---------------------------------------------------------------------------
# Host-side equivalents of the BaseModel introspection helpers.
# ---------------------------------------------------------------------------
class BaseModelJAX:
    """JAX analogue of BaseModel: no parameters, identity forward."""

    def __init__(self):
        # __init__ of the PyTorch BaseModel registers no parameters.
        self.params = {}

    def parameters(self):
        return list(self.params.values())

    def forward(self, x, *, use_kernel: bool = True):
        return base_model_forward(x, use_kernel=use_kernel)

    def __call__(self, x, *, use_kernel: bool = True):
        return self.forward(x, use_kernel=use_kernel)

    def trainable_parameter_count(self):
        return int(sum(int(jnp.size(p)) for p in self.parameters()))

    def short_summary(self):
        print("Trainable parameters: {}".format(self.trainable_parameter_count()))


if __name__ == "__main__":
    key = jax.random.PRNGKey(0)
    # Small NCHW input consistent with summary()'s torch.randn(2, *input_size).
    x = jax.random.normal(key, (2, 4, 16, 16), dtype=jnp.float32)
    # Host copy of the expected output (robust even with aliased/donated buffers).
    x_host = np.asarray(x)

    model = BaseModelJAX()
    y = model(x)  # kernel path: (2,4,16,16) -> lane-dense (1, 2048) slab
    y = jax.block_until_ready(y)

    # Correctness: abstract forward implemented as exact identity.
    assert y.shape == x_host.shape
    assert y.dtype == jnp.float32
    assert np.array_equal(np.asarray(y), x_host)
    assert model.trainable_parameter_count() == 0

    print("KERNEL_OK")
</pallas_src>

<mosaic_0001>
module attributes {stable_mosaic.version = 11 : i64} {
  func.func @_identity_kernel(%arg0: i32, %arg1: memref<1x2048xf32, #tpu.memory_space<vmem>>, %arg2: memref<1x2048xf32, #tpu.memory_space<vmem>>) attributes {dimension_semantics = [#tpu.dimension_semantics<parallel>], iteration_bounds = array<i64: 1>, scalar_prefetch = 0 : i64, scratch_operands = 0 : i64, tpu.core_type = #tpu.core_type<tc>, window_params = [{transform_indices = @transform_0, window_bounds = array<i64: 1, 2048>}, {transform_indices = @transform_1, window_bounds = array<i64: 1, 2048>}]} {
    %c0 = arith.constant 0 : index
    %c0_0 = arith.constant 0 : index
    %0 = vector.load %arg1[%c0, %c0_0] : memref<1x2048xf32, #tpu.memory_space<vmem>>, vector<1x2048xf32>
    %c0_1 = arith.constant 0 : index
    %c0_2 = arith.constant 0 : index
    %1 = vector.load %arg2[%c0_1, %c0_2] : memref<1x2048xf32, #tpu.memory_space<vmem>>, vector<1x2048xf32>
    tpu.vector_store %arg2[%c0_1, %c0_2], %0 {strides = array<i32>} : memref<1x2048xf32, #tpu.memory_space<vmem>>, vector<1x2048xf32>,
    return
  }
  func.func @transform_0(%arg0: i32) -> (i32, i32) {
    %c0_i32 = arith.constant 0 : i32
    %c0_i32_0 = arith.constant 0 : i32
    return %arg0, %c0_i32 : i32, i32
  }
  func.func @transform_1(%arg0: i32) -> (i32, i32) {
    %c0_i32 = arith.constant 0 : i32
    %c0_i32_0 = arith.constant 0 : i32
    return %arg0, %c0_i32 : i32, i32
  }
}

</mosaic_0001>

<llo_original>
// kernel: _identity_forward_kernel_path.1
$region0: #{_identity_forward_kernel_path.1}
  #allocation0 [shape = 'u32[]', space=smem, size = 0x4, offset = 0x4, fixed_abs, tag = 'smem constant byte address 0x4 - core index']
  #allocation1 [shape = 'u32[72,128]{1,0:T(1,128)}', space=vmem, size = 0x9000, scoped, tag = 'internal scratch']
  %s0 = inlined_call_operand.vmem [shape: f32[1,2048], index: 0, kind: input, shape index: {}, may-alias: {0,1}]
  %s1 = inlined_call_operand.vmem [shape: f32[1,2048], index: 1, kind: output, shape index: {}, may-alias: {0,1}]
  %s2 = sld [smem:[#allocation0]]
  $region14: #{_identity_forward_kernel_path.1} parent=0
    _
  %s4 = ssub.s32 1, %s2
  %s5 = scalar_select 0, %s4, %s2
  // Predicated region
  $region2: #{_identity_forward_kernel_path.1} parent=0 // pred_check
    _
  $region3: #{_identity_forward_kernel_path.1} parent=0 // pred_check_branch
    %7 = sbr.rel (0) target = $region5
  $region4: #{_identity_forward_kernel_path.1} parent=0 // pred_region
    _
  $region5: #{_identity_forward_kernel_path.1} parent=0 // pred_fallthru
    _
  %v8 = vld [vmem:[%s0] sm:$0xff]
  %v9 = vld [vmem:[%s0 + $0x8] sm:$0xff]
  %10 = vst [vmem:[%s1] sm:$0xff] %v8
  %11 = vst [vmem:[%s1 + $0x8] sm:$0xff] %v9
  // Predicated region
  $region6: #{_identity_forward_kernel_path.1} parent=0 // pred_check
    _
  $region7: #{_identity_forward_kernel_path.1} parent=0 // pred_check_branch
    %13 = sbr.rel (0) target = $region9
  $region8: #{_identity_forward_kernel_path.1} parent=0 // pred_region
    _
  $region9: #{_identity_forward_kernel_path.1} parent=0 // pred_fallthru
    _
  // Predicated region
  $region10: #{_identity_forward_kernel_path.1} parent=0 // pred_check
    _
  $region11: #{_identity_forward_kernel_path.1} parent=0 // pred_check_branch
    %15 = sbr.rel (0) target = $region13
  $region12: #{_identity_forward_kernel_path.1} parent=0 // pred_region
    _
  $region13: #{_identity_forward_kernel_path.1} parent=0 // pred_fallthru
    _

</llo_original>
